<compile_context>
chip_gen: v7x
topology: tpu7x:2x2x1
jax: 0.10.0
libtpu: 0.0.40
codegen_flags: <defaults>
</compile_context>

<pallas_src>
import jax
import jax.numpy as jnp
from jax.experimental import pallas as pl
from jax.experimental.pallas import tpu as pltpu


def _blur_kernel(x_ref, o_ref):
    """x_ref / o_ref: (1, H, W, Cb) blocks, channels in the lane dimension."""
    x = x_ref[...].astype(jnp.float32)  # single upcast, hoisted out of the taps

    # Vertical pass along H: taps [1, 2, 1], zeros outside the image (padding=1).
    zrow = jnp.zeros_like(x[:, :1])
    v = 2.0 * x
    v = v + jnp.concatenate([zrow, x[:, :-1]], axis=1)     # x[h-1, w]
    v = v + jnp.concatenate([x[:, 1:], zrow], axis=1)      # x[h+1, w]

    # Horizontal pass along W: taps [1, 2, 1], then the global 1/16 scale.
    zcol = jnp.zeros_like(v[:, :, :1])
    h = 2.0 * v
    h = h + jnp.concatenate([zcol, v[:, :, :-1]], axis=2)  # v[h, w-1]
    h = h + jnp.concatenate([v[:, :, 1:], zcol], axis=2)   # v[h, w+1]

    o_ref[...] = (h * (1.0 / 16.0)).astype(o_ref.dtype)


def _pick_channel_block(C, H, W, itemsize, budget_bytes=8 << 20):
    """Largest channel block that is a multiple of 128, divides C, and whose
    double-buffered input + output tiles stay under a conservative VMEM budget
    (safe for v5e's 16 MiB scoped default and v7x's 64 MiB physical VMEM)."""
    if C % 128 != 0:
        return C  # small / irregular channel counts: take the whole channel dim
    cb = C
    while cb > 128:
        if C % cb == 0 and 2 * 2 * H * W * cb * itemsize <= budget_bytes:
            return cb
        cb -= 128
    return 128


def blur_forward_nhwc(x_nhwc: jax.Array) -> jax.Array:
    """Depthwise 3x3 binomial blur with padding=1. x: (N, H, W, C)."""
    N, H, W, C = x_nhwc.shape
    cb = _pick_channel_block(C, H, W, jnp.dtype(x_nhwc.dtype).itemsize)

    return pl.pallas_call(
        _blur_kernel,
        out_shape=jax.ShapeDtypeStruct((N, H, W, C), x_nhwc.dtype),
        grid_spec=pltpu.PrefetchScalarGridSpec(
            num_scalar_prefetch=0,
            grid=(N, C // cb),
            in_specs=[pl.BlockSpec((1, H, W, cb), lambda n, c: (n, 0, 0, c))],
            out_specs=pl.BlockSpec((1, H, W, cb), lambda n, c: (n, 0, 0, c)),
        ),
        compiler_params=pltpu.CompilerParams(
            dimension_semantics=("parallel", "parallel"),
            vmem_limit_bytes=32 * 1024 * 1024,
        ),
    )(x_nhwc)


def blur_forward(x: jax.Array) -> jax.Array:
    """PyTorch-layout entry point: x (N, C, H, W) -> (N, C, H, W).

    The transposes are layout plumbing to match the NCHW PyTorch API; inside a
    channels-last network call blur_forward_nhwc directly and skip both copies.
    """
    x_nhwc = jnp.transpose(x, (0, 2, 3, 1))
    out_nhwc = blur_forward_nhwc(x_nhwc)
    return jnp.transpose(out_nhwc, (0, 3, 1, 2))


def make_blur_weights(channel: int):
    """Deterministic weights matching Blur.__init__ (used for the reference
    check only; the kernel bakes in the identical per-channel scalar taps)."""
    w = jnp.array([[1.0, 2.0, 1.0],
                   [2.0, 4.0, 2.0],
                   [1.0, 2.0, 1.0]], dtype=jnp.float32)
    w = (w / w.sum()).reshape(1, 1, 3, 3)
    weight = jnp.tile(w, (channel, 1, 1, 1))       # (C, 1, 3, 3)
    weight_flip = jnp.flip(weight, axis=(2, 3))    # unused in forward
    return weight, weight_flip


if __name__ == "__main__":
    key = jax.random.PRNGKey(0)
    N, C, H, W = 2, 4, 16, 16
    x = jax.random.normal(key, (N, C, H, W), dtype=jnp.float32)

    out = jax.block_until_ready(blur_forward(x))

    # Reference: XLA depthwise conv, identical to F.conv2d(padding=1, groups=C).
    weight, _weight_flip = make_blur_weights(C)
    ref = jax.lax.conv_general_dilated(
        x, weight,
        window_strides=(1, 1),
        padding=((1, 1), (1, 1)),
        dimension_numbers=("NCHW", "OIHW", "NCHW"),
        feature_group_count=C,
    )
    assert out.shape == (N, C, H, W)
    assert jnp.allclose(out, ref, atol=1e-5, rtol=1e-5)

    print("KERNEL_OK")
</pallas_src>

<mosaic_0001>
module attributes {stable_mosaic.version = 11 : i64} {
  func.func @_blur_kernel(%arg0: i32, %arg1: i32, %arg2: memref<1x16x16x4xf32, #tpu.memory_space<vmem>>, %arg3: memref<1x16x16x4xf32, #tpu.memory_space<vmem>>) attributes {dimension_semantics = [#tpu.dimension_semantics<parallel>, #tpu.dimension_semantics<parallel>], iteration_bounds = array<i64: 2, 1>, scalar_prefetch = 0 : i64, scratch_operands = 0 : i64, tpu.core_type = #tpu.core_type<tc>, window_params = [{transform_indices = @transform_0, window_bounds = array<i64: 1, 16, 16, 4>}, {transform_indices = @transform_1, window_bounds = array<i64: 1, 16, 16, 4>}]} {
    %c0 = arith.constant 0 : index
    %c0_0 = arith.constant 0 : index
    %c0_1 = arith.constant 0 : index
    %c0_2 = arith.constant 0 : index
    %0 = vector.load %arg2[%c0, %c0_0, %c0_1, %c0_2] : memref<1x16x16x4xf32, #tpu.memory_space<vmem>>, vector<1x16x16x4xf32>
    %cst = arith.constant 0.000000e+00 : f32
    %1 = vector.broadcast %cst : f32 to vector<1x1x16x4xf32>
    %cst_3 = arith.constant 2.000000e+00 : f32
    %2 = vector.broadcast %cst_3 : f32 to vector<1x16x16x4xf32>
    %3 = arith.mulf %2, %0 : vector<1x16x16x4xf32>
    %4 = vector.extract_strided_slice %0 {offsets = [0, 0, 0, 0], sizes = [1, 15, 16, 4], strides = [1, 1, 1, 1]} : vector<1x16x16x4xf32> to vector<1x15x16x4xf32>
    %5 = tpu.concatenate %1, %4 in 1 : vector<1x1x16x4xf32>, vector<1x15x16x4xf32> -> vector<1x16x16x4xf32>
    %6 = arith.addf %3, %5 : vector<1x16x16x4xf32>
    %7 = vector.extract_strided_slice %0 {offsets = [0, 1, 0, 0], sizes = [1, 15, 16, 4], strides = [1, 1, 1, 1]} : vector<1x16x16x4xf32> to vector<1x15x16x4xf32>
    %8 = tpu.concatenate %7, %1 in 1 : vector<1x15x16x4xf32>, vector<1x1x16x4xf32> -> vector<1x16x16x4xf32>
    %9 = arith.addf %6, %8 : vector<1x16x16x4xf32>
    %cst_4 = arith.constant 0.000000e+00 : f32
    %10 = vector.broadcast %cst_4 : f32 to vector<1x16x1x4xf32>
    %cst_5 = arith.constant 2.000000e+00 : f32
    %11 = vector.broadcast %cst_5 : f32 to vector<1x16x16x4xf32>
    %12 = arith.mulf %11, %9 : vector<1x16x16x4xf32>
    %13 = vector.extract_strided_slice %9 {offsets = [0, 0, 0, 0], sizes = [1, 16, 15, 4], strides = [1, 1, 1, 1]} : vector<1x16x16x4xf32> to vector<1x16x15x4xf32>
    %14 = tpu.concatenate %10, %13 in 2 : vector<1x16x1x4xf32>, vector<1x16x15x4xf32> -> vector<1x16x16x4xf32>
    %15 = arith.addf %12, %14 : vector<1x16x16x4xf32>
    %16 = vector.extract_strided_slice %9 {offsets = [0, 0, 1, 0], sizes = [1, 16, 15, 4], strides = [1, 1, 1, 1]} : vector<1x16x16x4xf32> to vector<1x16x15x4xf32>
    %17 = tpu.concatenate %16, %10 in 2 : vector<1x16x15x4xf32>, vector<1x16x1x4xf32> -> vector<1x16x16x4xf32>
    %18 = arith.addf %15, %17 : vector<1x16x16x4xf32>
    %cst_6 = arith.constant 6.250000e-02 : f32
    %19 = vector.broadcast %cst_6 : f32 to vector<1x16x16x4xf32>
    %20 = arith.mulf %18, %19 : vector<1x16x16x4xf32>
    %c0_7 = arith.constant 0 : index
    %c0_8 = arith.constant 0 : index
    %c0_9 = arith.constant 0 : index
    %c0_10 = arith.constant 0 : index
    %21 = vector.load %arg3[%c0_7, %c0_8, %c0_9, %c0_10] : memref<1x16x16x4xf32, #tpu.memory_space<vmem>>, vector<1x16x16x4xf32>
    tpu.vector_store %arg3[%c0_7, %c0_8, %c0_9, %c0_10], %20 {strides = array<i32>} : memref<1x16x16x4xf32, #tpu.memory_space<vmem>>, vector<1x16x16x4xf32>,
    return
  }
  func.func @transform_0(%arg0: i32, %arg1: i32) -> (i32, i32, i32, i32) {
    %c0_i32 = arith.constant 0 : i32
    %c0_i32_0 = arith.constant 0 : i32
    %c0_i32_1 = arith.constant 0 : i32
    return %arg0, %c0_i32, %c0_i32_0, %arg1 : i32, i32, i32, i32
  }
  func.func @transform_1(%arg0: i32, %arg1: i32) -> (i32, i32, i32, i32) {
    %c0_i32 = arith.constant 0 : i32
    %c0_i32_0 = arith.constant 0 : i32
    %c0_i32_1 = arith.constant 0 : i32
    return %arg0, %c0_i32, %c0_i32_0, %arg1 : i32, i32, i32, i32
  }
}

</mosaic_0001>

<llo_original>
// kernel: tpu_custom_call.1
$region0: #{tpu_custom_call.1}
  #allocation0 [shape = 'u32[]', space=smem, size = 0x4, offset = 0x4, fixed_abs, tag = 'smem constant byte address 0x4 - core index']
  #allocation1 [shape = 'u32[144,128]{1,0:T(1,128)}', space=vmem, size = 0x12000, scoped, tag = 'internal scratch']
  %s0 = inlined_call_operand.vmem [shape: f32[2,16,16,4], index: 0, kind: input, shape index: {}]
  %s1 = inlined_call_operand.vmem [shape: f32[2,16,16,4], index: 1, kind: output, shape index: {}]
  %s2 = sld [smem:[#allocation0]]
  $region37: #{tpu_custom_call.1} parent=0
    _
  %s4 = ssub.s32 1, %s2
  %s5 = scalar_select 0, %s4, %s2
  loop: start=0, step=1, limit=4
  $region2: #{tpu_custom_call.1} parent=0 // loop_pre_header
    _
  $region3: #{tpu_custom_call.1} parent=0 // loop_header
    %s7 = sphi 0, %s11
    %p8 = scmp.ge.s32.totalorder %s7, 4
    %s14 = sphi 0, %s26
    %s15 = sphi 0, %s22
    %s16 = sphi 0, %s14
    %s17 = sphi 0, %s15
    %s18 = sphi 0, %s16
    %s19 = sphi 0, %s17
    %s31 = sphi 0, %s33
    %s34 = sphi 0, %s31
    %s35 = sphi 0, %s34
    %s51 = sphi 0, %s35
    %s59 = sphi 0, %s61
    %s62 = sphi 0, %s59
    %s63 = sphi 0, %s62
    %s79 = sphi 0, %s63
  $region4: #{tpu_custom_call.1} parent=0 // loop_header_branch
    %10 = sbr.rel (%p8) target = $region8
  $region5: #{tpu_custom_call.1} parent=0 // loop_body
    %s12 = ssub.s32 %s7, 1
    %s13 = ssub.s32 %s7, 2
    %s20 = sadd.s32 1, %s15
    %p21 = scmp.ge.s32.totalorder %s20, 1
    %s22 = scalar_select %p21, 0, %s20
    %s23 = sadd.s32 1, %s14
    %s24 = scalar_select %p21, %s23, %s14
    %p25 = scmp.ge.s32.totalorder %s24, 2
    %s26 = scalar_select %p25, 0, %s24
    %s27 = ssub.s32 %s14, %s26
    %s28 = ssub.s32 %s15, %s22
    %s29 = sor.u32 %s27, %s28
    %p30 = scmp.eq.s32.totalorder %s29, 0
    %s32 = sadd.s32 %s31, 1
    %s33 = scalar_select %p30, %s31, %s32
    %p36 = pneg %p30
    %p37 = scmp.eq.s32.totalorder %s7, 1
    %p38 = por %p36, %p37
    %p39 = scmp.ne.s32.totalorder %s31, %s34
    %p40 = scmp.eq.s32.totalorder %s7, 0
    %p41 = por %p39, %p40
    %p42 = scmp.ne.s32.totalorder %s31, %s34
    %p43 = scmp.eq.s32.totalorder %s12, 1
    %p44 = por %p42, %p43
    %p45 = scmp.ne.s32.totalorder %s34, %s35
    %p46 = scmp.eq.s32.totalorder %s12, 0
    %p47 = por %p45, %p46
    %p48 = scmp.ne.s32.totalorder %s34, %s35
    %p49 = scmp.eq.s32.totalorder %s13, 1
    %p50 = por %p48, %p49
    %p52 = scmp.ne.s32.totalorder %s35, %s51
    %p53 = scmp.eq.s32.totalorder %s13, 0
    %p54 = por %p52, %p53
    %s55 = ssub.s32 %s14, %s26
    %s56 = ssub.s32 %s15, %s22
    %s57 = sor.u32 %s55, %s56
    %p58 = scmp.eq.s32.totalorder %s57, 0
    %s60 = sadd.s32 %s59, 1
    %s61 = scalar_select %p58, %s59, %s60
    %p64 = pneg %p58
    %p65 = scmp.eq.s32.totalorder %s7, 1
    %p66 = por %p64, %p65
    %p67 = scmp.ne.s32.totalorder %s59, %s62
    %p68 = scmp.eq.s32.totalorder %s7, 0
    %p69 = por %p67, %p68
    %p70 = scmp.ne.s32.totalorder %s59, %s62
    %p71 = scmp.eq.s32.totalorder %s12, 1
    %p72 = por %p70, %p71
    %p73 = scmp.ne.s32.totalorder %s62, %s63
    %p74 = scmp.eq.s32.totalorder %s12, 0
    %p75 = por %p73, %p74
    %p76 = scmp.ne.s32.totalorder %s62, %s63
    %p77 = scmp.eq.s32.totalorder %s13, 1
    %p78 = por %p76, %p77
    %p80 = scmp.ne.s32.totalorder %s63, %s79
    %p81 = scmp.eq.s32.totalorder %s13, 0
    %p82 = por %p80, %p81
    %p83 = scmp.le.s32.totalorder 1, %s7
    %p84 = scmp.lt.s32.totalorder %s7, 3
    %p85 = pnand %p83, %p84
    %p86 = pneg %p85
    // Predicated region
    $region9: #{tpu_custom_call.1} parent=5 // pred_check
      _
    $region10: #{tpu_custom_call.1} parent=5 // pred_check_branch
      %88 = sbr.rel (%p85) target = $region12
    $region11: #{tpu_custom_call.1} parent=5 // pred_region
      %s89 = ssub.s32 %s7, 1
    $region12: #{tpu_custom_call.1} parent=5 // pred_fallthru
      _
    %p90 = scmp.lt.s32.totalorder %s7, 2
    // Predicated region
    $region13: #{tpu_custom_call.1} parent=5 // pred_check
      %p91 = pneg %p90
    $region14: #{tpu_custom_call.1} parent=5 // pred_check_branch
      %93 = sbr.rel (%p91) target = $region16
    $region15: #{tpu_custom_call.1} parent=5 // pred_region
      // Predicated region
      $region17: #{tpu_custom_call.1} parent=15 // pred_check
        %p94 = pneg %p41
      $region18: #{tpu_custom_call.1} parent=15 // pred_check_branch
        %96 = sbr.rel (%p94) target = $region20
      $region19: #{tpu_custom_call.1} parent=15 // pred_region
        %p97 = scmp.lt.s32.totalorder %s14, 1
        %s98 = scalar_select %p97, %s14, 1
        %p99 = scmp.lt.s32.totalorder %s15, 0
        %s100 = scalar_select %p99, %s15, 0
        %s101 = smul.addr %s98, 32
        %s102 = sadd.s32 %s100, %s101
        %s103 = smul.addr %s102, 8
        %s104 = scalar_lea.vmem %s0, %s103
      $region20: #{tpu_custom_call.1} parent=15 // pred_fallthru
        _
    $region16: #{tpu_custom_call.1} parent=5 // pred_fallthru
      _
    %p105 = scmp.le.s32.totalorder 1, %s7
    %p106 = scmp.lt.s32.totalorder %s7, 3
    %p107 = pnand %p105, %p106
    %p108 = pneg %p107
    // Predicated region
    $region21: #{tpu_custom_call.1} parent=5 // pred_check
      _
    $region22: #{tpu_custom_call.1} parent=5 // pred_check_branch
      %110 = sbr.rel (%p107) target = $region24
    $region23: #{tpu_custom_call.1} parent=5 // pred_region
      %s111 = ssub.s32 %s7, 1
      %p112 = scmp.lt.s32.totalorder %s16, 1
      %s113 = scalar_select %p112, %s16, 1
      %p114 = scmp.lt.s32.totalorder %s17, 0
      %s115 = scalar_select %p114, %s17, 0
      %s116 = smul.addr %s113, 32
      %s117 = sadd.s32 %s115, %s116
      %s118 = smul.addr %s117, 8
      %s119 = scalar_lea.vmem %s0, %s118
      %p120 = pneg %p47
      %p121 = pneg %p44
      %p122 = pneg %p75
      %p123 = pneg %p72
      %p124 = scmp.lt.s32.totalorder %s16, 1
      %s125 = scalar_select %p124, %s16, 1
      %p126 = scmp.lt.s32.totalorder %s17, 0
      %s127 = scalar_select %p126, %s17, 0
      %s128 = smul.addr %s125, 32
      %s129 = sadd.s32 %s127, %s128
      %s130 = smul.addr %s129, 8
      %s131 = scalar_lea.vmem %s1, %s130
      %p132 = scmp.lt.s32.totalorder %s16, 1
      %s133 = scalar_select %p132, %s16, 1
      %p134 = scmp.lt.s32.totalorder %s17, 0
      %s135 = scalar_select %p134, %s17, 0
      %s136 = smul.addr %s133, 32
      %s137 = sadd.s32 %s135, %s136
      %s138 = smul.addr %s137, 8
      %s139 = scalar_lea.vmem %s0, %s138
      %p140 = scmp.lt.s32.totalorder %s16, 1
      %s141 = scalar_select %p140, %s16, 1
      %p142 = scmp.lt.s32.totalorder %s17, 0
      %s143 = scalar_select %p142, %s17, 0
      %s144 = smul.addr %s141, 32
      %s145 = sadd.s32 %s143, %s144
      %s146 = smul.addr %s145, 8
      %s147 = scalar_lea.vmem %s1, %s146
      %v148 = vld [vmem:[%s139] sm:$0xff]
      %v149 = vld [vmem:[%s139 + $0x8] sm:$0xff]
      %v150 = vld [vmem:[%s139 + $0x10] sm:$0xff]
      %v151 = vld [vmem:[%s139 + $0x18] sm:$0xff]
      %v152 = vld [vmem:[%s139 + $0x20] sm:$0xff]
      %v153 = vld [vmem:[%s139 + $0x28] sm:$0xff]
      %v154 = vld [vmem:[%s139 + $0x30] sm:$0xff]
      %v155 = vld [vmem:[%s139 + $0x38] sm:$0xff]
      %v156 = vld [vmem:[%s139 + $0x40] sm:$0xff]
      %v157 = vld [vmem:[%s139 + $0x48] sm:$0xff]
      %v158 = vld [vmem:[%s139 + $0x50] sm:$0xff]
      %v159 = vld [vmem:[%s139 + $0x58] sm:$0xff]
      %v160 = vld [vmem:[%s139 + $0x60] sm:$0xff]
      %v161 = vld [vmem:[%s139 + $0x68] sm:$0xff]
      %v162 = vld [vmem:[%s139 + $0x70] sm:$0xff]
      %v163 = vld [vmem:[%s139 + $0x78] sm:$0xff]
      %v164 = vld [vmem:[%s139 + $0x80] sm:$0xff]
      %v165 = vld [vmem:[%s139 + $0x88] sm:$0xff]
      %v166 = vld [vmem:[%s139 + $0x90] sm:$0xff]
      %v167 = vld [vmem:[%s139 + $0x98] sm:$0xff]
      %v168 = vld [vmem:[%s139 + $0xa0] sm:$0xff]
      %v169 = vld [vmem:[%s139 + $0xa8] sm:$0xff]
      %v170 = vld [vmem:[%s139 + $0xb0] sm:$0xff]
      %v171 = vld [vmem:[%s139 + $0xb8] sm:$0xff]
      %v172 = vld [vmem:[%s139 + $0xc0] sm:$0xff]
      %v173 = vld [vmem:[%s139 + $0xc8] sm:$0xff]
      %v174 = vld [vmem:[%s139 + $0xd0] sm:$0xff]
      %v175 = vld [vmem:[%s139 + $0xd8] sm:$0xff]
      %v176 = vld [vmem:[%s139 + $0xe0] sm:$0xff]
      %v177 = vld [vmem:[%s139 + $0xe8] sm:$0xff]
      %v178 = vld [vmem:[%s139 + $0xf0] sm:$0xff]
      %v179 = vld [vmem:[%s139 + $0xf8] sm:$0xff]
      %v180 = vmul.f32 %v148, 2.0
      %v181 = vmul.f32 %v149, 2.0
      %v182 = vmul.f32 %v150, 2.0
      %v183 = vmul.f32 %v151, 2.0
      %v184 = vmul.f32 %v152, 2.0
      %v185 = vmul.f32 %v153, 2.0
      %v186 = vmul.f32 %v154, 2.0
      %v187 = vmul.f32 %v155, 2.0
      %v188 = vmul.f32 %v156, 2.0
      %v189 = vmul.f32 %v157, 2.0
      %v190 = vmul.f32 %v158, 2.0
      %v191 = vmul.f32 %v159, 2.0
      %v192 = vmul.f32 %v160, 2.0
      %v193 = vmul.f32 %v161, 2.0
      %v194 = vmul.f32 %v162, 2.0
      %v195 = vmul.f32 %v163, 2.0
      %v196 = vmul.f32 %v164, 2.0
      %v197 = vmul.f32 %v165, 2.0
      %v198 = vmul.f32 %v166, 2.0
      %v199 = vmul.f32 %v167, 2.0
      %v200 = vmul.f32 %v168, 2.0
      %v201 = vmul.f32 %v169, 2.0
      %v202 = vmul.f32 %v170, 2.0
      %v203 = vmul.f32 %v171, 2.0
      %v204 = vmul.f32 %v172, 2.0
      %v205 = vmul.f32 %v173, 2.0
      %v206 = vmul.f32 %v174, 2.0
      %v207 = vmul.f32 %v175, 2.0
      %v208 = vmul.f32 %v176, 2.0
      %v209 = vmul.f32 %v177, 2.0
      %v210 = vmul.f32 %v178, 2.0
      %v211 = vmul.f32 %v179, 2.0
      %v212 = vadd.f32 %v180, 0.0
      %v213 = vadd.f32 %v181, 0.0
      %v214 = vadd.f32 %v182, %v148
      %v215 = vadd.f32 %v183, %v149
      %v216 = vadd.f32 %v184, %v150
      %v217 = vadd.f32 %v185, %v151
      %v218 = vadd.f32 %v186, %v152
      %v219 = vadd.f32 %v187, %v153
      %v220 = vadd.f32 %v188, %v154
      %v221 = vadd.f32 %v189, %v155
      %v222 = vadd.f32 %v190, %v156
      %v223 = vadd.f32 %v191, %v157
      %v224 = vadd.f32 %v192, %v158
      %v225 = vadd.f32 %v193, %v159
      %v226 = vadd.f32 %v194, %v160
      %v227 = vadd.f32 %v195, %v161
      %v228 = vadd.f32 %v196, %v162
      %v229 = vadd.f32 %v197, %v163
      %v230 = vadd.f32 %v198, %v164
      %v231 = vadd.f32 %v199, %v165
      %v232 = vadd.f32 %v200, %v166
      %v233 = vadd.f32 %v201, %v167
      %v234 = vadd.f32 %v202, %v168
      %v235 = vadd.f32 %v203, %v169
      %v236 = vadd.f32 %v204, %v170
      %v237 = vadd.f32 %v205, %v171
      %v238 = vadd.f32 %v206, %v172
      %v239 = vadd.f32 %v207, %v173
      %v240 = vadd.f32 %v208, %v174
      %v241 = vadd.f32 %v209, %v175
      %v242 = vadd.f32 %v210, %v176
      %v243 = vadd.f32 %v211, %v177
      %v244 = vadd.f32 %v212, %v150
      %v245 = vadd.f32 %v213, %v151
      %v246 = vadd.f32 %v214, %v152
      %v247 = vadd.f32 %v215, %v153
      %v248 = vadd.f32 %v216, %v154
      %v249 = vadd.f32 %v217, %v155
      %v250 = vadd.f32 %v218, %v156
      %v251 = vadd.f32 %v219, %v157
      %v252 = vadd.f32 %v220, %v158
      %v253 = vadd.f32 %v221, %v159
      %v254 = vadd.f32 %v222, %v160
      %v255 = vadd.f32 %v223, %v161
      %v256 = vadd.f32 %v224, %v162
      %v257 = vadd.f32 %v225, %v163
      %v258 = vadd.f32 %v226, %v164
      %v259 = vadd.f32 %v227, %v165
      %v260 = vadd.f32 %v228, %v166
      %v261 = vadd.f32 %v229, %v167
      %v262 = vadd.f32 %v230, %v168
      %v263 = vadd.f32 %v231, %v169
      %v264 = vadd.f32 %v232, %v170
      %v265 = vadd.f32 %v233, %v171
      %v266 = vadd.f32 %v234, %v172
      %v267 = vadd.f32 %v235, %v173
      %v268 = vadd.f32 %v236, %v174
      %v269 = vadd.f32 %v237, %v175
      %v270 = vadd.f32 %v238, %v176
      %v271 = vadd.f32 %v239, %v177
      %v272 = vadd.f32 %v240, %v178
      %v273 = vadd.f32 %v241, %v179
      %v274 = vadd.f32 %v242, 0.0
      %v275 = vadd.f32 %v243, 0.0
      %v276 = vmul.f32 %v244, 2.0
      %v277 = vmul.f32 %v245, 2.0
      %v278 = vmul.f32 %v246, 2.0
      %v279 = vmul.f32 %v247, 2.0
      %v280 = vmul.f32 %v248, 2.0
      %v281 = vmul.f32 %v249, 2.0
      %v282 = vmul.f32 %v250, 2.0
      %v283 = vmul.f32 %v251, 2.0
      %v284 = vmul.f32 %v252, 2.0
      %v285 = vmul.f32 %v253, 2.0
      %v286 = vmul.f32 %v254, 2.0
      %v287 = vmul.f32 %v255, 2.0
      %v288 = vmul.f32 %v256, 2.0
      %v289 = vmul.f32 %v257, 2.0
      %v290 = vmul.f32 %v258, 2.0
      %v291 = vmul.f32 %v259, 2.0
      %v292 = vmul.f32 %v260, 2.0
      %v293 = vmul.f32 %v261, 2.0
      %v294 = vmul.f32 %v262, 2.0
      %v295 = vmul.f32 %v263, 2.0
      %v296 = vmul.f32 %v264, 2.0
      %v297 = vmul.f32 %v265, 2.0
      %v298 = vmul.f32 %v266, 2.0
      %v299 = vmul.f32 %v267, 2.0
      %v300 = vmul.f32 %v268, 2.0
      %v301 = vmul.f32 %v269, 2.0
      %v302 = vmul.f32 %v270, 2.0
      %v303 = vmul.f32 %v271, 2.0
      %v304 = vmul.f32 %v272, 2.0
      %v305 = vmul.f32 %v273, 2.0
      %v306 = vmul.f32 %v274, 2.0
      %v307 = vmul.f32 %v275, 2.0
      %vm340 = vcmask 1040384
      %v341 = vrot.slane %v244, 7
      %v342 = vrot.slane %v245, 7
      %v343 = vsel %vm340, %v341, %v342
      %v344 = vrot.slane %v246, 7
      %v345 = vrot.slane %v247, 7
      %v346 = vsel %vm340, %v344, %v345
      %v347 = vrot.slane %v248, 7
      %v348 = vrot.slane %v249, 7
      %v349 = vsel %vm340, %v347, %v348
      %v350 = vrot.slane %v250, 7
      %v351 = vrot.slane %v251, 7
      %v352 = vsel %vm340, %v350, %v351
      %v353 = vrot.slane %v252, 7
      %v354 = vrot.slane %v253, 7
      %v355 = vsel %vm340, %v353, %v354
      %v356 = vrot.slane %v254, 7
      %v357 = vrot.slane %v255, 7
      %v358 = vsel %vm340, %v356, %v357
      %v359 = vrot.slane %v256, 7
      %v360 = vrot.slane %v257, 7
      %v361 = vsel %vm340, %v359, %v360
      %v362 = vrot.slane %v258, 7
      %v363 = vrot.slane %v259, 7
      %v364 = vsel %vm340, %v362, %v363
      %v365 = vrot.slane %v260, 7
      %v366 = vrot.slane %v261, 7
      %v367 = vsel %vm340, %v365, %v366
      %v368 = vrot.slane %v262, 7
      %v369 = vrot.slane %v263, 7
      %v370 = vsel %vm340, %v368, %v369
      %v371 = vrot.slane %v264, 7
      %v372 = vrot.slane %v265, 7
      %v373 = vsel %vm340, %v371, %v372
      %v374 = vrot.slane %v266, 7
      %v375 = vrot.slane %v267, 7
      %v376 = vsel %vm340, %v374, %v375
      %v377 = vrot.slane %v268, 7
      %v378 = vrot.slane %v269, 7
      %v379 = vsel %vm340, %v377, %v378
      %v380 = vrot.slane %v270, 7
      %v381 = vrot.slane %v271, 7
      %v382 = vsel %vm340, %v380, %v381
      %v383 = vrot.slane %v272, 7
      %v384 = vrot.slane %v273, 7
      %v385 = vsel %vm340, %v383, %v384
      %v386 = vrot.slane %v274, 7
      %v387 = vrot.slane %v275, 7
      %v388 = vsel %vm340, %v386, %v387
      %v421 = vsel %vm340, 0.0, %v341
      %v422 = vsel %vm340, 0.0, %v344
      %v423 = vsel %vm340, 0.0, %v347
      %v424 = vsel %vm340, 0.0, %v350
      %v425 = vsel %vm340, 0.0, %v353
      %v426 = vsel %vm340, 0.0, %v356
      %v427 = vsel %vm340, 0.0, %v359
      %v428 = vsel %vm340, 0.0, %v362
      %v429 = vsel %vm340, 0.0, %v365
      %v430 = vsel %vm340, 0.0, %v368
      %v431 = vsel %vm340, 0.0, %v371
      %v432 = vsel %vm340, 0.0, %v374
      %v433 = vsel %vm340, 0.0, %v377
      %v434 = vsel %vm340, 0.0, %v380
      %v435 = vsel %vm340, 0.0, %v383
      %v436 = vsel %vm340, 0.0, %v386
      %v437 = vadd.f32 %v276, %v421
      %v438 = vadd.f32 %v277, %v343
      %v439 = vadd.f32 %v278, %v422
      %v440 = vadd.f32 %v279, %v346
      %v441 = vadd.f32 %v280, %v423
      %v442 = vadd.f32 %v281, %v349
      %v443 = vadd.f32 %v282, %v424
      %v444 = vadd.f32 %v283, %v352
      %v445 = vadd.f32 %v284, %v425
      %v446 = vadd.f32 %v285, %v355
      %v447 = vadd.f32 %v286, %v426
      %v448 = vadd.f32 %v287, %v358
      %v449 = vadd.f32 %v288, %v427
      %v450 = vadd.f32 %v289, %v361
      %v451 = vadd.f32 %v290, %v428
      %v452 = vadd.f32 %v291, %v364
      %v453 = vadd.f32 %v292, %v429
      %v454 = vadd.f32 %v293, %v367
      %v455 = vadd.f32 %v294, %v430
      %v456 = vadd.f32 %v295, %v370
      %v457 = vadd.f32 %v296, %v431
      %v458 = vadd.f32 %v297, %v373
      %v459 = vadd.f32 %v298, %v432
      %v460 = vadd.f32 %v299, %v376
      %v461 = vadd.f32 %v300, %v433
      %v462 = vadd.f32 %v301, %v379
      %v463 = vadd.f32 %v302, %v434
      %v464 = vadd.f32 %v303, %v382
      %v465 = vadd.f32 %v304, %v435
      %v466 = vadd.f32 %v305, %v385
      %v467 = vadd.f32 %v306, %v436
      %v468 = vadd.f32 %v307, %v388
      %vm469 = vcmask 1046528
      %v470 = vrot.slane %v244, 1
      %v471 = vrot.slane %v245, 1
      %v472 = vsel %vm469, %v470, %v471
      %v473 = vrot.slane %v246, 1
      %v474 = vrot.slane %v247, 1
      %v475 = vsel %vm469, %v473, %v474
      %v476 = vrot.slane %v248, 1
      %v477 = vrot.slane %v249, 1
      %v478 = vsel %vm469, %v476, %v477
      %v479 = vrot.slane %v250, 1
      %v480 = vrot.slane %v251, 1
      %v481 = vsel %vm469, %v479, %v480
      %v482 = vrot.slane %v252, 1
      %v483 = vrot.slane %v253, 1
      %v484 = vsel %vm469, %v482, %v483
      %v485 = vrot.slane %v254, 1
      %v486 = vrot.slane %v255, 1
      %v487 = vsel %vm469, %v485, %v486
      %v488 = vrot.slane %v256, 1
      %v489 = vrot.slane %v257, 1
      %v490 = vsel %vm469, %v488, %v489
      %v491 = vrot.slane %v258, 1
      %v492 = vrot.slane %v259, 1
      %v493 = vsel %vm469, %v491, %v492
      %v494 = vrot.slane %v260, 1
      %v495 = vrot.slane %v261, 1
      %v496 = vsel %vm469, %v494, %v495
      %v497 = vrot.slane %v262, 1
      %v498 = vrot.slane %v263, 1
      %v499 = vsel %vm469, %v497, %v498
      %v500 = vrot.slane %v264, 1
      %v501 = vrot.slane %v265, 1
      %v502 = vsel %vm469, %v500, %v501
      %v503 = vrot.slane %v266, 1
      %v504 = vrot.slane %v267, 1
      %v505 = vsel %vm469, %v503, %v504
      %v506 = vrot.slane %v268, 1
      %v507 = vrot.slane %v269, 1
      %v508 = vsel %vm469, %v506, %v507
      %v509 = vrot.slane %v270, 1
      %v510 = vrot.slane %v271, 1
      %v511 = vsel %vm469, %v509, %v510
      %v512 = vrot.slane %v272, 1
      %v513 = vrot.slane %v273, 1
      %v514 = vsel %vm469, %v512, %v513
      %v515 = vrot.slane %v274, 1
      %v516 = vrot.slane %v275, 1
      %v517 = vsel %vm469, %v515, %v516
      %v550 = vsel %vm469, %v471, 0.0
      %v551 = vsel %vm469, %v474, 0.0
      %v552 = vsel %vm469, %v477, 0.0
      %v553 = vsel %vm469, %v480, 0.0
      %v554 = vsel %vm469, %v483, 0.0
      %v555 = vsel %vm469, %v486, 0.0
      %v556 = vsel %vm469, %v489, 0.0
      %v557 = vsel %vm469, %v492, 0.0
      %v558 = vsel %vm469, %v495, 0.0
      %v559 = vsel %vm469, %v498, 0.0
      %v560 = vsel %vm469, %v501, 0.0
      %v561 = vsel %vm469, %v504, 0.0
      %v562 = vsel %vm469, %v507, 0.0
      %v563 = vsel %vm469, %v510, 0.0
      %v564 = vsel %vm469, %v513, 0.0
      %v565 = vsel %vm469, %v516, 0.0
      %v566 = vadd.f32 %v437, %v472
      %v567 = vadd.f32 %v438, %v550
      %v568 = vadd.f32 %v439, %v475
      %v569 = vadd.f32 %v440, %v551
      %v570 = vadd.f32 %v441, %v478
      %v571 = vadd.f32 %v442, %v552
      %v572 = vadd.f32 %v443, %v481
      %v573 = vadd.f32 %v444, %v553
      %v574 = vadd.f32 %v445, %v484
      %v575 = vadd.f32 %v446, %v554
      %v576 = vadd.f32 %v447, %v487
      %v577 = vadd.f32 %v448, %v555
      %v578 = vadd.f32 %v449, %v490
      %v579 = vadd.f32 %v450, %v556
      %v580 = vadd.f32 %v451, %v493
      %v581 = vadd.f32 %v452, %v557
      %v582 = vadd.f32 %v453, %v496
      %v583 = vadd.f32 %v454, %v558
      %v584 = vadd.f32 %v455, %v499
      %v585 = vadd.f32 %v456, %v559
      %v586 = vadd.f32 %v457, %v502
      %v587 = vadd.f32 %v458, %v560
      %v588 = vadd.f32 %v459, %v505
      %v589 = vadd.f32 %v460, %v561
      %v590 = vadd.f32 %v461, %v508
      %v591 = vadd.f32 %v462, %v562
      %v592 = vadd.f32 %v463, %v511
      %v593 = vadd.f32 %v464, %v563
      %v594 = vadd.f32 %v465, %v514
      %v595 = vadd.f32 %v466, %v564
      %v596 = vadd.f32 %v467, %v517
      %v597 = vadd.f32 %v468, %v565
      %v598 = vmul.f32 %v566, 0.0625
      %v599 = vmul.f32 %v567, 0.0625
      %v600 = vmul.f32 %v568, 0.0625
      %v601 = vmul.f32 %v569, 0.0625
      %v602 = vmul.f32 %v570, 0.0625
      %v603 = vmul.f32 %v571, 0.0625
      %v604 = vmul.f32 %v572, 0.0625
      %v605 = vmul.f32 %v573, 0.0625
      %v606 = vmul.f32 %v574, 0.0625
      %v607 = vmul.f32 %v575, 0.0625
      %v608 = vmul.f32 %v576, 0.0625
      %v609 = vmul.f32 %v577, 0.0625
      %v610 = vmul.f32 %v578, 0.0625
      %v611 = vmul.f32 %v579, 0.0625
      %v612 = vmul.f32 %v580, 0.0625
      %v613 = vmul.f32 %v581, 0.0625
      %v614 = vmul.f32 %v582, 0.0625
      %v615 = vmul.f32 %v583, 0.0625
      %v616 = vmul.f32 %v584, 0.0625
      %v617 = vmul.f32 %v585, 0.0625
      %v618 = vmul.f32 %v586, 0.0625
      %v619 = vmul.f32 %v587, 0.0625
      %v620 = vmul.f32 %v588, 0.0625
      %v621 = vmul.f32 %v589, 0.0625
      %v622 = vmul.f32 %v590, 0.0625
      %v623 = vmul.f32 %v591, 0.0625
      %v624 = vmul.f32 %v592, 0.0625
      %v625 = vmul.f32 %v593, 0.0625
      %v626 = vmul.f32 %v594, 0.0625
      %v627 = vmul.f32 %v595, 0.0625
      %v628 = vmul.f32 %v596, 0.0625
      %v629 = vmul.f32 %v597, 0.0625
      %vm630 = vcmask 31744
      %631 = vst.msk [vmem:[%s147] sm:$0xff] %vm630, %v598
      %632 = vst.msk [vmem:[%s147 + $0x8] sm:$0xff] %vm630, %v599
      %633 = vst.msk [vmem:[%s147 + $0x10] sm:$0xff] %vm630, %v600
      %634 = vst.msk [vmem:[%s147 + $0x18] sm:$0xff] %vm630, %v601
      %635 = vst.msk [vmem:[%s147 + $0x20] sm:$0xff] %vm630, %v602
      %636 = vst.msk [vmem:[%s147 + $0x28] sm:$0xff] %vm630, %v603
      %637 = vst.msk [vmem:[%s147 + $0x30] sm:$0xff] %vm630, %v604
      %638 = vst.msk [vmem:[%s147 + $0x38] sm:$0xff] %vm630, %v605
      %639 = vst.msk [vmem:[%s147 + $0x40] sm:$0xff] %vm630, %v606
      %640 = vst.msk [vmem:[%s147 + $0x48] sm:$0xff] %vm630, %v607
      %641 = vst.msk [vmem:[%s147 + $0x50] sm:$0xff] %vm630, %v608
      %642 = vst.msk [vmem:[%s147 + $0x58] sm:$0xff] %vm630, %v609
      %643 = vst.msk [vmem:[%s147 + $0x60] sm:$0xff] %vm630, %v610
      %644 = vst.msk [vmem:[%s147 + $0x68] sm:$0xff] %vm630, %v611
      %645 = vst.msk [vmem:[%s147 + $0x70] sm:$0xff] %vm630, %v612
      %646 = vst.msk [vmem:[%s147 + $0x78] sm:$0xff] %vm630, %v613
      %647 = vst.msk [vmem:[%s147 + $0x80] sm:$0xff] %vm630, %v614
      %648 = vst.msk [vmem:[%s147 + $0x88] sm:$0xff] %vm630, %v615
      %649 = vst.msk [vmem:[%s147 + $0x90] sm:$0xff] %vm630, %v616
      %650 = vst.msk [vmem:[%s147 + $0x98] sm:$0xff] %vm630, %v617
      %651 = vst.msk [vmem:[%s147 + $0xa0] sm:$0xff] %vm630, %v618
      %652 = vst.msk [vmem:[%s147 + $0xa8] sm:$0xff] %vm630, %v619
      %653 = vst.msk [vmem:[%s147 + $0xb0] sm:$0xff] %vm630, %v620
      %654 = vst.msk [vmem:[%s147 + $0xb8] sm:$0xff] %vm630, %v621
      %655 = vst.msk [vmem:[%s147 + $0xc0] sm:$0xff] %vm630, %v622
      %656 = vst.msk [vmem:[%s147 + $0xc8] sm:$0xff] %vm630, %v623
      %657 = vst.msk [vmem:[%s147 + $0xd0] sm:$0xff] %vm630, %v624
      %658 = vst.msk [vmem:[%s147 + $0xd8] sm:$0xff] %vm630, %v625
      %659 = vst.msk [vmem:[%s147 + $0xe0] sm:$0xff] %vm630, %v626
      %660 = vst.msk [vmem:[%s147 + $0xe8] sm:$0xff] %vm630, %v627
      %661 = vst.msk [vmem:[%s147 + $0xf0] sm:$0xff] %vm630, %v628
      %662 = vst.msk [vmem:[%s147 + $0xf8] sm:$0xff] %vm630, %v629
      %p663 = scmp.lt.s32.totalorder %s16, 1
      %s664 = scalar_select %p663, %s16, 1
      %p665 = scmp.lt.s32.totalorder %s17, 0
      %s666 = scalar_select %p665, %s17, 0
      %s667 = smul.addr %s664, 32
      %s668 = sadd.s32 %s666, %s667
      %s669 = smul.addr %s668, 8
      %s670 = scalar_lea.vmem %s1, %s669
      // Predicated region
      $region25: #{tpu_custom_call.1} parent=23 // pred_check
        %p671 = pneg %p72
      $region26: #{tpu_custom_call.1} parent=23 // pred_check_branch
        %673 = sbr.rel (%p671) target = $region28
      $region27: #{tpu_custom_call.1} parent=23 // pred_region
        _
      $region28: #{tpu_custom_call.1} parent=23 // pred_fallthru
        _
    $region24: #{tpu_custom_call.1} parent=5 // pred_fallthru
      _
    %p674 = scmp.le.s32.totalorder 2, %s7
    // Predicated region
    $region29: #{tpu_custom_call.1} parent=5 // pred_check
      %p675 = pneg %p674
    $region30: #{tpu_custom_call.1} parent=5 // pred_check_branch
      %677 = sbr.rel (%p675) target = $region32
    $region31: #{tpu_custom_call.1} parent=5 // pred_region
      %s678 = ssub.s32 %s7, 2
      // Predicated region
      $region33: #{tpu_custom_call.1} parent=31 // pred_check
        %p679 = pneg %p78
      $region34: #{tpu_custom_call.1} parent=31 // pred_check_branch
        %681 = sbr.rel (%p679) target = $region36
      $region35: #{tpu_custom_call.1} parent=31 // pred_region
        %p682 = scmp.lt.s32.totalorder %s18, 1
        %s683 = scalar_select %p682, %s18, 1
        %p684 = scmp.lt.s32.totalorder %s19, 0
        %s685 = scalar_select %p684, %s19, 0
        %s686 = smul.addr %s683, 32
        %s687 = sadd.s32 %s685, %s686
        %s688 = smul.addr %s687, 8
        %s689 = scalar_lea.vmem %s1, %s688
      $region36: #{tpu_custom_call.1} parent=31 // pred_fallthru
        _
    $region32: #{tpu_custom_call.1} parent=5 // pred_fallthru
      _
  $region6: #{tpu_custom_call.1} parent=0 // loop_footer
    %s11 = sadd.s32 1, %s7
  $region7: #{tpu_custom_call.1} parent=0 // loop_footer_branch
    %6 = sbr.rel target = $region3
  $region8: #{tpu_custom_call.1} parent=0 // loop_exit
    _

</llo_original>
